<compile_context>
chip_gen: v6e
topology: v6e:2x2x1
jax: 0.10.0
libtpu: 0.0.40
codegen_flags: <defaults>
</compile_context>

<pallas_src>
import jax
import jax.numpy as jnp
from jax.experimental import pallas as pl
from jax.experimental.pallas import tpu as pltpu


def make_deconv_bn_relu(N, H, W, Cin, Cout, K, eps):
    assert K % 2 == 1, "only odd kernel sizes (crop_size == 0) implemented"
    # TODO(synk): even kernel sizes (crop_size = 1) and stride > 1 (output_padding) paths
    # are not implemented; running_mean/running_var momentum updates are not produced.
    pad = K - 1 - (K - 1) // 2        # equivalent-conv padding (=1 for K=3)
    HW = H * W                        # lane axis inside the kernel (multiple of 128)
    KKC = K * K * Cin                 # matmul contraction depth
    inv_count = 1.0 / float(N * HW)   # BN normalizer (biased, training-mode forward)

    # ---------------- fused kernel: conv matmul + BN batch stats + affine + ReLU ----------------
    def fused_kernel(wT_ref, p_ref, gamma_ref, beta_ref, out_ref):
        w = wT_ref[...]                                            # (Cout, KKC) f32
        # One MXU matmul per batch element: (Cout, KKC) @ (KKC, HW) -> (Cout, HW), f32 acc.
        accs = [jnp.dot(w, p_ref[n], preferred_element_type=jnp.float32)
                for n in range(N)]
        # BatchNorm2d training-mode statistics over (N, H, W): lane reduce + sum over N.
        mean = sum(a.sum(axis=1, keepdims=True) for a in accs) * inv_count      # (Cout, 1)
        cent = [a - mean for a in accs]
        var = sum((c * c).sum(axis=1, keepdims=True) for c in cent) * inv_count  # biased
        scale = jax.lax.rsqrt(var + eps) * gamma_ref[...]                         # (Cout, 1)
        shift = beta_ref[...]                                                     # (Cout, 1)
        for n in range(N):
            out_ref[n] = jnp.maximum(cent[n] * scale + shift, 0.0)

    # ---------------- one-time weight prep (hoisted out of the per-call path) ----------------
    def prepare_weight(w_pt):
        # ConvTranspose2d(stride=1, padding=(K-1)//2, output_padding=0) == Conv2d with the
        # spatially flipped, in/out-swapped weight and padding K-1-(K-1)//2.  Contraction
        # order (ky, kx, cin) matches the patch matrix built in fwd().
        w_flip = w_pt[:, :, ::-1, ::-1]                             # (Cin, Cout, K, K)
        wT = jnp.transpose(w_flip, (1, 2, 3, 0)).reshape(Cout, KKC)  # (Cout, K*K*Cin)
        return wT.astype(jnp.float32)

    # ---------------- per-call forward ----------------
    def fwd(x_nchw, wT, gamma, beta):
        # Channel-major im2col straight from NCHW: pad spatially, take the K*K shifted
        # views, concat along the channel axis.  Reshapes below are free (contiguous);
        # no NCHW->NHWC transpose and no patch-matrix transpose.
        xp = jnp.pad(x_nchw, ((0, 0), (0, 0), (pad, pad), (pad, pad)))
        patches = jnp.concatenate(
            [xp[:, :, ky:ky + H, kx:kx + W].reshape(N, Cin, HW)
             for ky in range(K) for kx in range(K)],
            axis=1)                                                 # (N, K*K*Cin, H*W)

        g2 = gamma.reshape(Cout, 1).astype(jnp.float32)
        b2 = beta.reshape(Cout, 1).astype(jnp.float32)

        vmem = pl.BlockSpec(memory_space=pltpu.MemorySpace.VMEM)
        y3 = pl.pallas_call(
            fused_kernel,
            out_shape=jax.ShapeDtypeStruct((N, Cout, HW), jnp.float32),
            in_specs=[vmem, vmem, vmem, vmem],
            out_specs=vmem,
            compiler_params=pltpu.CompilerParams(
                allow_input_fusion=[True, True, True, True]),
        )(wT, patches, g2, b2)

        # (N, Cout, H*W) -> (N, Cout, H, W): pure reshape, no relayout/transpose.
        return y3.reshape(N, Cout, H, W)

    return prepare_weight, fwd


if __name__ == "__main__":
    N, Cin, H, W = 2, 4, 16, 16
    Cout, K = 8, 3
    eps = 1e-3

    key = jax.random.PRNGKey(0)
    kx_, kw_, kg_, kb_ = jax.random.split(key, 4)

    x = jax.random.normal(kx_, (N, Cin, H, W), jnp.float32)               # NCHW (PyTorch)
    w_pt = 0.1 * jax.random.normal(kw_, (Cin, Cout, K, K), jnp.float32)   # ConvTranspose2d weight
    gamma = 1.0 + 0.1 * jax.random.normal(kg_, (Cout,), jnp.float32)      # BN weight
    beta = 0.1 * jax.random.normal(kb_, (Cout,), jnp.float32)             # BN bias

    prepare_weight, fwd = make_deconv_bn_relu(N, H, W, Cin, Cout, K, eps)
    wT = jax.block_until_ready(prepare_weight(w_pt))   # one-time prep, hoisted from hot path
    fwd_jit = jax.jit(fwd)
    y = fwd_jit(x, wT, gamma, beta)
    jax.block_until_ready(y)

    # ----- plain-JAX f32 reference -----
    pad = K - 1 - (K - 1) // 2
    w_oihw = jnp.transpose(w_pt[:, :, ::-1, ::-1], (1, 0, 2, 3))          # (Cout, Cin, K, K)
    conv_ref = jax.lax.conv_general_dilated(
        x, w_oihw, (1, 1), [(pad, pad), (pad, pad)],
        dimension_numbers=("NCHW", "OIHW", "NCHW"),
        precision=jax.lax.Precision.HIGHEST)
    mean = conv_ref.mean(axis=(0, 2, 3), keepdims=True)
    var = ((conv_ref - mean) ** 2).mean(axis=(0, 2, 3), keepdims=True)
    y_ref = jnp.maximum(
        (conv_ref - mean) * jax.lax.rsqrt(var + eps) * gamma.reshape(1, Cout, 1, 1)
        + beta.reshape(1, Cout, 1, 1), 0.0)

    assert y.shape == (N, Cout, H, W)
    err = float(jnp.abs(y - y_ref).max())
    assert jnp.allclose(y, y_ref, atol=2e-3, rtol=2e-3), f"max abs err = {err}"
    print("KERNEL_OK")
</pallas_src>

<mosaic_0001>
module attributes {stable_mosaic.version = 11 : i64} {
  func.func @fused_kernel(%arg0: memref<8x36xf32, #tpu.memory_space<vmem>>, %arg1: memref<2x36x256xf32, #tpu.memory_space<vmem>>, %arg2: memref<8x1xf32, #tpu.memory_space<vmem>>, %arg3: memref<8x1xf32, #tpu.memory_space<vmem>>, %arg4: memref<2x8x256xf32, #tpu.memory_space<vmem>>) attributes {dimension_semantics = [], scalar_prefetch = 0 : i64, scratch_operands = 0 : i64, tpu.core_type = #tpu.core_type<tc>} {
    %c0 = arith.constant 0 : index
    %c0_0 = arith.constant 0 : index
    %0 = vector.load %arg0[%c0, %c0_0] : memref<8x36xf32, #tpu.memory_space<vmem>>, vector<8x36xf32>
    %c0_1 = arith.constant 0 : index
    %c0_2 = arith.constant 0 : index
    %c0_3 = arith.constant 0 : index
    %1 = vector.load %arg1[%c0_1, %c0_2, %c0_3] : memref<2x36x256xf32, #tpu.memory_space<vmem>>, vector<1x36x256xf32>
    %2 = vector.shape_cast %1 : vector<1x36x256xf32> to vector<36x256xf32>
    %cst = arith.constant dense<0.000000e+00> : vector<8x256xf32>
    %3 = tpu.matmul %0, %2, %cst {dimension_numbers = #tpu.dot_dimension_numbers<[1], [0], [0], [1], [0, 0, 1, 1], [], []>} : vector<8x36xf32>, vector<36x256xf32>, vector<8x256xf32> -> vector<8x256xf32>
    %c1 = arith.constant 1 : index
    %c0_4 = arith.constant 0 : index
    %c0_5 = arith.constant 0 : index
    %4 = vector.load %arg1[%c1, %c0_4, %c0_5] : memref<2x36x256xf32, #tpu.memory_space<vmem>>, vector<1x36x256xf32>
    %5 = vector.shape_cast %4 : vector<1x36x256xf32> to vector<36x256xf32>
    %cst_6 = arith.constant dense<0.000000e+00> : vector<8x256xf32>
    %6 = tpu.matmul %0, %5, %cst_6 {dimension_numbers = #tpu.dot_dimension_numbers<[1], [0], [0], [1], [0, 0, 1, 1], [], []>} : vector<8x36xf32>, vector<36x256xf32>, vector<8x256xf32> -> vector<8x256xf32>
    %cst_7 = arith.constant dense<0.000000e+00> : vector<8xf32>
    %7 = vector.multi_reduction <add>, %3, %cst_7 [1] : vector<8x256xf32> to vector<8xf32>
    %8 = vector.shape_cast %7 : vector<8xf32> to vector<8x1xf32>
    %cst_8 = arith.constant 0.000000e+00 : f32
    %9 = vector.broadcast %cst_8 : f32 to vector<8x1xf32>
    %10 = arith.addf %9, %8 : vector<8x1xf32>
    %cst_9 = arith.constant dense<0.000000e+00> : vector<8xf32>
    %11 = vector.multi_reduction <add>, %6, %cst_9 [1] : vector<8x256xf32> to vector<8xf32>
    %12 = vector.shape_cast %11 : vector<8xf32> to vector<8x1xf32>
    %13 = arith.addf %10, %12 : vector<8x1xf32>
    %cst_10 = arith.constant 0.001953125 : f32
    %14 = vector.broadcast %cst_10 : f32 to vector<8x1xf32>
    %15 = arith.mulf %13, %14 : vector<8x1xf32>
    %16 = vector.broadcast %15 : vector<8x1xf32> to vector<8x256xf32>
    %17 = arith.subf %3, %16 : vector<8x256xf32>
    %18 = vector.broadcast %15 : vector<8x1xf32> to vector<8x256xf32>
    %19 = arith.subf %6, %18 : vector<8x256xf32>
    %20 = arith.mulf %17, %17 : vector<8x256xf32>
    %cst_11 = arith.constant dense<0.000000e+00> : vector<8xf32>
    %21 = vector.multi_reduction <add>, %20, %cst_11 [1] : vector<8x256xf32> to vector<8xf32>
    %22 = vector.shape_cast %21 : vector<8xf32> to vector<8x1xf32>
    %cst_12 = arith.constant 0.000000e+00 : f32
    %23 = vector.broadcast %cst_12 : f32 to vector<8x1xf32>
    %24 = arith.addf %23, %22 : vector<8x1xf32>
    %25 = arith.mulf %19, %19 : vector<8x256xf32>
    %cst_13 = arith.constant dense<0.000000e+00> : vector<8xf32>
    %26 = vector.multi_reduction <add>, %25, %cst_13 [1] : vector<8x256xf32> to vector<8xf32>
    %27 = vector.shape_cast %26 : vector<8xf32> to vector<8x1xf32>
    %28 = arith.addf %24, %27 : vector<8x1xf32>
    %cst_14 = arith.constant 0.001953125 : f32
    %29 = vector.broadcast %cst_14 : f32 to vector<8x1xf32>
    %30 = arith.mulf %28, %29 : vector<8x1xf32>
    %cst_15 = arith.constant 1.000000e-03 : f32
    %31 = vector.broadcast %cst_15 : f32 to vector<8x1xf32>
    %32 = arith.addf %30, %31 : vector<8x1xf32>
    %33 = math.rsqrt %32 : vector<8x1xf32>
    %c0_16 = arith.constant 0 : index
    %c0_17 = arith.constant 0 : index
    %34 = vector.load %arg2[%c0_16, %c0_17] : memref<8x1xf32, #tpu.memory_space<vmem>>, vector<8x1xf32>
    %35 = arith.mulf %33, %34 : vector<8x1xf32>
    %c0_18 = arith.constant 0 : index
    %c0_19 = arith.constant 0 : index
    %36 = vector.load %arg3[%c0_18, %c0_19] : memref<8x1xf32, #tpu.memory_space<vmem>>, vector<8x1xf32>
    %37 = vector.broadcast %35 : vector<8x1xf32> to vector<8x256xf32>
    %38 = arith.mulf %17, %37 : vector<8x256xf32>
    %39 = vector.broadcast %36 : vector<8x1xf32> to vector<8x256xf32>
    %40 = arith.addf %38, %39 : vector<8x256xf32>
    %cst_20 = arith.constant 0.000000e+00 : f32
    %41 = vector.broadcast %cst_20 : f32 to vector<8x256xf32>
    %42 = arith.maximumf %40, %41 : vector<8x256xf32>
    %c0_21 = arith.constant 0 : index
    %c0_22 = arith.constant 0 : index
    %c0_23 = arith.constant 0 : index
    %43 = vector.load %arg4[%c0_21, %c0_22, %c0_23] : memref<2x8x256xf32, #tpu.memory_space<vmem>>, vector<1x8x256xf32>
    %44 = vector.shape_cast %43 : vector<1x8x256xf32> to vector<8x256xf32>
    %45 = vector.shape_cast %42 : vector<8x256xf32> to vector<1x8x256xf32>
    tpu.vector_store %arg4[%c0_21, %c0_22, %c0_23], %45 {strides = array<i32>} : memref<2x8x256xf32, #tpu.memory_space<vmem>>, vector<1x8x256xf32>,
    %46 = vector.broadcast %35 : vector<8x1xf32> to vector<8x256xf32>
    %47 = arith.mulf %19, %46 : vector<8x256xf32>
    %48 = vector.broadcast %36 : vector<8x1xf32> to vector<8x256xf32>
    %49 = arith.addf %47, %48 : vector<8x256xf32>
    %cst_24 = arith.constant 0.000000e+00 : f32
    %50 = vector.broadcast %cst_24 : f32 to vector<8x256xf32>
    %51 = arith.maximumf %49, %50 : vector<8x256xf32>
    %c1_25 = arith.constant 1 : index
    %c0_26 = arith.constant 0 : index
    %c0_27 = arith.constant 0 : index
    %52 = vector.load %arg4[%c1_25, %c0_26, %c0_27] : memref<2x8x256xf32, #tpu.memory_space<vmem>>, vector<1x8x256xf32>
    %53 = vector.shape_cast %52 : vector<1x8x256xf32> to vector<8x256xf32>
    %54 = vector.shape_cast %51 : vector<8x256xf32> to vector<1x8x256xf32>
    tpu.vector_store %arg4[%c1_25, %c0_26, %c0_27], %54 {strides = array<i32>} : memref<2x8x256xf32, #tpu.memory_space<vmem>>, vector<1x8x256xf32>,
    return
  }
}

</mosaic_0001>

<llo_original>
// kernel: fwd.1
$region0: #{fwd.1}
  #allocation0 [shape = 'u32[]', space=smem, size = 0x4, offset = 0x4, fixed_abs, tag = 'smem constant byte address 0x4 - core index']
  #allocation1 [shape = 'u32[144,128]{1,0:T(1,128)}', space=vmem, size = 0x12000, scoped, tag = 'internal scratch']
  %s0 = inlined_call_operand.vmem [shape: f32[8,36], index: 0, kind: input, shape index: {}]
  %s1 = inlined_call_operand.vmem [shape: f32[2,36,256], index: 1, kind: input, shape index: {}]
  %s2 = inlined_call_operand.vmem [shape: f32[8,1], index: 2, kind: input, shape index: {}]
  %s3 = inlined_call_operand.vmem [shape: f32[8,1], index: 3, kind: input, shape index: {}]
  %s4 = inlined_call_operand.vmem [shape: f32[2,8,256], index: 4, kind: output, shape index: {}]
  %s5 = sld [smem:[#allocation0]]
  $region26: #{fwd.1} parent=0
    _
  %s7 = ssub.s32 1, %s5
  %s8 = scalar_select 0, %s7, %s5
  // Predicated region
  $region2: #{fwd.1} parent=0 // pred_check
    _
  $region3: #{fwd.1} parent=0 // pred_check_branch
    %10 = sbr.rel (0) target = $region5
  $region4: #{fwd.1} parent=0 // pred_region
    _
  $region5: #{fwd.1} parent=0 // pred_fallthru
    _
  // Predicated region
  $region6: #{fwd.1} parent=0 // pred_check
    _
  $region7: #{fwd.1} parent=0 // pred_check_branch
    %12 = sbr.rel (0) target = $region9
  $region8: #{fwd.1} parent=0 // pred_region
    _
  $region9: #{fwd.1} parent=0 // pred_fallthru
    _
  // Predicated region
  $region10: #{fwd.1} parent=0 // pred_check
    _
  $region11: #{fwd.1} parent=0 // pred_check_branch
    %14 = sbr.rel (0) target = $region13
  $region12: #{fwd.1} parent=0 // pred_region
    _
  $region13: #{fwd.1} parent=0 // pred_fallthru
    _
  // Predicated region
  $region14: #{fwd.1} parent=0 // pred_check
    _
  $region15: #{fwd.1} parent=0 // pred_check_branch
    %16 = sbr.rel (0) target = $region17
  $region16: #{fwd.1} parent=0 // pred_region
    _
  $region17: #{fwd.1} parent=0 // pred_fallthru
    _
  %v17 = vld [vmem:[%s0] sm:$0xff]
  %v18 = vld [vmem:[%s1] sm:$0xff]
  %v19 = vld [vmem:[%s1 + $0x8] sm:$0xff]
  %v20 = vld [vmem:[%s1 + $0x10] sm:$0xff]
  %v21 = vld [vmem:[%s1 + $0x18] sm:$0xff]
  %v22 = vld [vmem:[%s1 + $0x20] sm:$0xff]
  %v23 = vld [vmem:[%s1 + $0x28] sm:$0xff]
  %v24 = vld [vmem:[%s1 + $0x30] sm:$0xff]
  %v25 = vld [vmem:[%s1 + $0x38] sm:$0xff]
  %v26 = vld [vmem:[%s1 + $0x40] sm:$0xf]
  %v27 = vld [vmem:[%s1 + $0x48] sm:$0xf]
  %vm28 = vcmask 293888
  %v30 = vsel %vm28, %v17, 0
  %vm32 = vcmask 1043456
  %v34 = vsel %vm32, %v26, 0
  %v37 = vsel %vm32, %v27, 0
  %39 = vmatprep.subr.mxu0 0.0
  %40 = vmatpush1.msra.mxu0 0.0
  %41 = vmatprep.subr.mxu0 0.0
  %42 = vmatpush1.msra.mxu0 0.0
  %43 = vmatprep.subr.mxu0 0.0
  %44 = vmatpush1.msra.mxu0 0.0
  %45 = vmatprep.subr.mxu0 0.0
  %46 = vmatpush1.msra.mxu0 0.0
  %47 = vmatprep.subr.mxu0 0.0
  %48 = vmatpush1.msra.mxu0 0.0
  %49 = vmatprep.subr.mxu0 0.0
  %50 = vmatpush1.msra.mxu0 0.0
  %51 = vmatprep.subr.mxu0 0.0
  %52 = vmatpush1.msra.mxu0 0.0
  %53 = vmatprep.subr.mxu0 0.0
  %54 = vmatpush1.msra.mxu0 0.0
  %55 = vmatprep.subr.mxu0 0.0
  %56 = vmatpush1.msra.mxu0 0.0
  %57 = vmatprep.subr.mxu0 0.0
  %58 = vmatpush1.msra.mxu0 0.0
  %59 = vmatprep.subr.mxu0 0.0
  %60 = vmatpush1.msra.mxu0 0.0
  %61 = vmatprep.subr.mxu0 %v37
  %62 = vmatpush1.msra.mxu0 %v34
  %63 = vmatprep.subr.mxu0 %v25
  %64 = vmatpush1.msra.mxu0 %v24
  %65 = vmatprep.subr.mxu0 %v23
  %66 = vmatpush1.msra.mxu0 %v22
  %67 = vmatprep.subr.mxu0 %v21
  %68 = vmatpush1.msra.mxu0 %v20
  %69 = vmatprep.subr.mxu0 %v19
  %70 = vmatpush1.msra.mxu0 %v18
  %71 = vmatprep.subr.mxu0 0.0
  %72 = vmatpush2.msra.mxu0 0.0
  %73 = vmatprep.subr.mxu0 0.0
  %74 = vmatpush2.msra.mxu0 0.0
  %75 = vmatprep.subr.mxu0 0.0
  %76 = vmatpush2.msra.mxu0 0.0
  %77 = vmatprep.subr.mxu0 0.0
  %78 = vmatpush2.msra.mxu0 0.0
  %79 = vmatprep.subr.mxu0 0.0
  %80 = vmatpush2.msra.mxu0 0.0
  %81 = vmatprep.subr.mxu0 0.0
  %82 = vmatpush2.msra.mxu0 0.0
  %83 = vmatprep.subr.mxu0 0.0
  %84 = vmatpush2.msra.mxu0 0.0
  %85 = vmatprep.subr.mxu0 0.0
  %86 = vmatpush2.msra.mxu0 0.0
  %87 = vmatprep.subr.mxu0 0.0
  %88 = vmatpush2.msra.mxu0 0.0
  %89 = vmatprep.subr.mxu0 0.0
  %90 = vmatpush2.msra.mxu0 0.0
  %91 = vmatprep.subr.mxu0 0.0
  %92 = vmatpush2.msra.mxu0 0.0
  %93 = vmatprep.subr.mxu0 0.0
  %94 = vmatpush2.msra.mxu0 0.0
  %95 = vmatprep.subr.mxu0 0.0
  %96 = vmatpush2.msra.mxu0 0.0
  %97 = vmatprep.subr.mxu0 0.0
  %98 = vmatpush2.msra.mxu0 0.0
  %99 = vmatprep.subr.mxu0 0.0
  %100 = vmatpush2.msra.mxu0 0.0
  %101 = vmatprep.subr.mxu0 0.0
  %102 = vmatpush2.msra.mxu0 0.0
  %103 = vmatprep.mubr.f32.mxu0 0.0
  %104 = vmatmul.mubr.f32.gmra.mxu0 %v30
  %v105 = vpop.f32.mrf.mxu0
  %v106 = vadd.f32 0.0, %v105
  %v107 = vpop.f32.mrf.mxu0
  %v108 = vadd.f32 0.0, %v107
  %109 = vdwg.mxu0
  %s110 = scalar_lea.vmem %s1, 80
  %v111 = vld [vmem:[%s110] sm:$0xff]
  %v112 = vld [vmem:[%s110 + $0x8] sm:$0xff]
  %v113 = vld [vmem:[%s110 + $0x10] sm:$0xff]
  %v114 = vld [vmem:[%s110 + $0x18] sm:$0xff]
  %v115 = vld [vmem:[%s110 + $0x20] sm:$0xff]
  %v116 = vld [vmem:[%s110 + $0x28] sm:$0xff]
  %v117 = vld [vmem:[%s110 + $0x30] sm:$0xff]
  %v118 = vld [vmem:[%s110 + $0x38] sm:$0xff]
  %v119 = vld [vmem:[%s110 + $0x40] sm:$0xf]
  %v120 = vld [vmem:[%s110 + $0x48] sm:$0xf]
  %v122 = vsel %vm32, %v119, 0
  %v125 = vsel %vm32, %v120, 0
  %127 = vmatprep.subr.mxu0 0.0
  %128 = vmatpush1.msra.mxu0 0.0
  %129 = vmatprep.subr.mxu0 0.0
  %130 = vmatpush1.msra.mxu0 0.0
  %131 = vmatprep.subr.mxu0 0.0
  %132 = vmatpush1.msra.mxu0 0.0
  %133 = vmatprep.subr.mxu0 0.0
  %134 = vmatpush1.msra.mxu0 0.0
  %135 = vmatprep.subr.mxu0 0.0
  %136 = vmatpush1.msra.mxu0 0.0
  %137 = vmatprep.subr.mxu0 0.0
  %138 = vmatpush1.msra.mxu0 0.0
  %139 = vmatprep.subr.mxu0 0.0
  %140 = vmatpush1.msra.mxu0 0.0
  %141 = vmatprep.subr.mxu0 0.0
  %142 = vmatpush1.msra.mxu0 0.0
  %143 = vmatprep.subr.mxu0 0.0
  %144 = vmatpush1.msra.mxu0 0.0
  %145 = vmatprep.subr.mxu0 0.0
  %146 = vmatpush1.msra.mxu0 0.0
  %147 = vmatprep.subr.mxu0 0.0
  %148 = vmatpush1.msra.mxu0 0.0
  %149 = vmatprep.subr.mxu0 %v125
  %150 = vmatpush1.msra.mxu0 %v122
  %151 = vmatprep.subr.mxu0 %v118
  %152 = vmatpush1.msra.mxu0 %v117
  %153 = vmatprep.subr.mxu0 %v116
  %154 = vmatpush1.msra.mxu0 %v115
  %155 = vmatprep.subr.mxu0 %v114
  %156 = vmatpush1.msra.mxu0 %v113
  %157 = vmatprep.subr.mxu0 %v112
  %158 = vmatpush1.msra.mxu0 %v111
  %159 = vmatprep.subr.mxu0 0.0
  %160 = vmatpush2.msra.mxu0 0.0
  %161 = vmatprep.subr.mxu0 0.0
  %162 = vmatpush2.msra.mxu0 0.0
  %163 = vmatprep.subr.mxu0 0.0
  %164 = vmatpush2.msra.mxu0 0.0
  %165 = vmatprep.subr.mxu0 0.0
  %166 = vmatpush2.msra.mxu0 0.0
  %167 = vmatprep.subr.mxu0 0.0
  %168 = vmatpush2.msra.mxu0 0.0
  %169 = vmatprep.subr.mxu0 0.0
  %170 = vmatpush2.msra.mxu0 0.0
  %171 = vmatprep.subr.mxu0 0.0
  %172 = vmatpush2.msra.mxu0 0.0
  %173 = vmatprep.subr.mxu0 0.0
  %174 = vmatpush2.msra.mxu0 0.0
  %175 = vmatprep.subr.mxu0 0.0
  %176 = vmatpush2.msra.mxu0 0.0
  %177 = vmatprep.subr.mxu0 0.0
  %178 = vmatpush2.msra.mxu0 0.0
  %179 = vmatprep.subr.mxu0 0.0
  %180 = vmatpush2.msra.mxu0 0.0
  %181 = vmatprep.subr.mxu0 0.0
  %182 = vmatpush2.msra.mxu0 0.0
  %183 = vmatprep.subr.mxu0 0.0
  %184 = vmatpush2.msra.mxu0 0.0
  %185 = vmatprep.subr.mxu0 0.0
  %186 = vmatpush2.msra.mxu0 0.0
  %187 = vmatprep.subr.mxu0 0.0
  %188 = vmatpush2.msra.mxu0 0.0
  %189 = vmatprep.subr.mxu0 0.0
  %190 = vmatpush2.msra.mxu0 0.0
  %191 = vmatprep.mubr.f32.mxu0 0.0
  %192 = vmatmul.mubr.f32.gmra.mxu0 %v30
  %v193 = vpop.f32.mrf.mxu0
  %v194 = vadd.f32 0.0, %v193
  %v195 = vpop.f32.mrf.mxu0
  %v196 = vadd.f32 0.0, %v195
  %197 = vdwg.mxu0
  %v198 = vadd.f32 %v106, %v108
  %199 = vadd.xlane.f32.xlu0 %v198
  %v200 = vpop.xlane.xlu0 %199
  %v201 = vadd.f32 %v200, 0.0
  %v202 = vadd.f32 %v194, %v196
  %203 = vadd.xlane.f32.xlu0 %v202
  %v204 = vpop.xlane.xlu0 %203
  %v205 = vadd.f32 %v201, %v204
  %v206 = vmul.f32 %v205, 0.001953125
  %v207 = vsub.f32 %v106, %v206
  %v208 = vsub.f32 %v108, %v206
  %v209 = vsub.f32 %v194, %v206
  %v210 = vsub.f32 %v196, %v206
  %v211 = vmul.f32 %v207, %v207
  %v212 = vmul.f32 %v208, %v208
  %v213 = vadd.f32 %v211, %v212
  %214 = vadd.xlane.f32.xlu0 %v213
  %v215 = vpop.xlane.xlu0 %214
  %v216 = vadd.f32 %v215, 0.0
  %v217 = vmul.f32 %v209, %v209
  %v218 = vmul.f32 %v210, %v210
  %v219 = vadd.f32 %v217, %v218
  %220 = vadd.xlane.f32.xlu0 %v219
  %v221 = vpop.xlane.xlu0 %220
  %v222 = vadd.f32 %v216, %v221
  %v223 = vmul.f32 %v222, 0.001953125
  %v224 = vadd.f32 %v223, 0.001
  %v225 = vrsqrt.pop %v224
  %v226 = vld [vmem:[%s2] sm:$0xff]
  %v227 = vmul.f32 %v225, %v226
  %v228 = vld [vmem:[%s3] sm:$0xff]
  %230 = vset.pattern.permute.xlu0 0
  %231 = vperm.xlu0 %230, %v227
  %v232 = vpop.permute.xlu0 %231
  %v234 = vmul.f32 %v207, %v232
  %v235 = vmul.f32 %v208, %v232
  %237 = vset.pattern.permute.xlu0 0
  %238 = vperm.xlu0 %237, %v228
  %v239 = vpop.permute.xlu0 %238
  %v241 = vadd.f32 %v234, %v239
  %v242 = vadd.f32 %v235, %v239
  %v243 = vmax.f32 %v241, 0.0
  %v244 = vmax.f32 %v242, 0.0
  %245 = vst [vmem:[%s4] sm:$0xff] %v243
  %246 = vst [vmem:[%s4 + $0x8] sm:$0xff] %v244
  %v247 = vmul.f32 %v209, %v232
  %v248 = vmul.f32 %v210, %v232
  %v249 = vadd.f32 %v247, %v239
  %v250 = vadd.f32 %v248, %v239
  %v251 = vmax.f32 %v249, 0.0
  %v252 = vmax.f32 %v250, 0.0
  %s253 = scalar_lea.vmem %s4, 16
  %254 = vst [vmem:[%s253] sm:$0xff] %v251
  %255 = vst [vmem:[%s253 + $0x8] sm:$0xff] %v252
  // Predicated region
  $region18: #{fwd.1} parent=0 // pred_check
    _
  $region19: #{fwd.1} parent=0 // pred_check_branch
    %257 = sbr.rel (0) target = $region21
  $region20: #{fwd.1} parent=0 // pred_region
    _
  $region21: #{fwd.1} parent=0 // pred_fallthru
    _
  // Predicated region
  $region22: #{fwd.1} parent=0 // pred_check
    _
  $region23: #{fwd.1} parent=0 // pred_check_branch
    %259 = sbr.rel (0) target = $region25
  $region24: #{fwd.1} parent=0 // pred_region
    _
  $region25: #{fwd.1} parent=0 // pred_fallthru
    _

</llo_original>
